<compile_context>
chip_gen: v5e
topology: v5e:2x2
jax: 0.10.0
libtpu: 0.0.40
codegen_flags: <defaults>
</compile_context>

<pallas_src>
import jax
import jax.numpy as jnp
import numpy as np
from jax.experimental import pallas as pl
from jax.experimental.pallas import tpu as pltpu


# ----------------------------------------------------------------------------
# Fused kernel: (folded BN + Mish) on 4 pooling taps -> sum -> 1x1 conv (MXU)
# ----------------------------------------------------------------------------
def _transition_kernel(x_ref, scale_ref, shift_ref, w_ref, o_ref):
    # x_ref:     (4, TM, Cin)   -- 4 taps (2x2 window) of each pooled output pixel
    # scale_ref: (1, Cin)       -- gamma / sqrt(var + eps)
    # shift_ref: (1, Cin)       -- beta - mean * scale
    # w_ref:     (Cin, CoutP)   -- 1x1 conv weight, pre-scaled by 0.25 (pool avg)
    # o_ref:     (TM, CoutP)    -- lane-dense output slab (CoutP % 128 == 0)
    tm, cin = x_ref.shape[1], x_ref.shape[2]

    # Hoist the broadcasts once; reused by all 4 taps.
    scale_b = jnp.broadcast_to(scale_ref[...], (tm, cin))
    shift_b = jnp.broadcast_to(shift_ref[...], (tm, cin))

    def mish_bn(v):
        y = v * scale_b + shift_b
        # Mish(y) = y * tanh(softplus(y)) = y * (u^2 + 2u) / (u^2 + 2u + 2), u = e^y.
        # Clamp the exponent: for y >= 20 the ratio is already 1.0 in f32.
        u = jnp.exp(jnp.minimum(y, 20.0))
        num = u * (u + 2.0)
        return y * num * pl.reciprocal(num + 2.0, approx=True)

    pooled = (
        mish_bn(x_ref[0]) + mish_bn(x_ref[1]) + mish_bn(x_ref[2]) + mish_bn(x_ref[3])
    )
    o_ref[...] = jnp.dot(
        pooled, w_ref[...], preferred_element_type=jnp.float32
    ).astype(o_ref.dtype)


# ----------------------------------------------------------------------------
# Wrapper: single-transpose layout plumbing + one pallas_call
# ----------------------------------------------------------------------------
def transition_forward(x_nchw, params, *, eps=1e-5, tile_m=512):
    gamma = params["gamma"]
    beta = params["beta"]
    mean = params["running_mean"]
    var = params["running_var"]
    w = params["conv_w"]  # (Cin, Cout)

    N, C, H, W = x_nchw.shape
    Ho, Wo = H // 2, W // 2  # AvgPool2d(2) floors odd dims
    Cout = w.shape[1]
    M = N * Ho * Wo

    # Folded eval-mode BN affine; fold the 1/4 pooling factor into the conv weight.
    scale1 = gamma / jnp.sqrt(var + eps)
    shift1 = beta - mean * scale1
    scale = scale1.reshape(1, C)
    shift = shift1.reshape(1, C)
    w_k = w * 0.25

    # Lane-dense output: zero-pad Cout to a multiple of 128 (pad only the tiny weight).
    cout_p = ((Cout + 127) // 128) * 128
    if cout_p != Cout:
        w_k = jnp.pad(w_k, ((0, 0), (0, cout_p - Cout)))

    # Taps-major repack with a SINGLE transpose:
    #   crop odd row/col -> (N, C, Ho, 2, Wo, 2) -> (2, 2, N, Ho, Wo, C) -> (4, M, C)
    x = x_nchw[:, :, : Ho * 2, : Wo * 2].reshape(N, C, Ho, 2, Wo, 2)
    x = jnp.transpose(x, (3, 5, 0, 2, 4, 1)).reshape(4, M, C)

    # Tile sizing: keep blocks VMEM-friendly and the parallel grid >= 2 (v7x: 2 TCs).
    tm = tile_m if C < 1024 else min(tile_m, 256)
    if M < 2 * tm:
        tm = max(8, (((M + 1) // 2 + 7) // 8) * 8)
    grid = (pl.cdiv(M, tm),)  # ragged last block: out-of-range writes are clipped

    # VMEM budget derived from the actual (double-buffered) block footprints.
    lanes_c = ((C + 127) // 128) * 128
    in_blk = 4 * tm * lanes_c * 4
    out_blk = tm * cout_p * 4
    w_blk = (((C + 7) // 8) * 8) * cout_p * 4
    vmem_est = 2 * (in_blk + out_blk + w_blk + 2 * 8 * lanes_c * 4)
    vmem_limit = int(min(max(vmem_est + (8 << 20), 32 << 20), 64 << 20))

    out2d = pl.pallas_call(
        _transition_kernel,
        out_shape=jax.ShapeDtypeStruct((M, cout_p), x.dtype),
        grid=grid,
        in_specs=[
            pl.BlockSpec((4, tm, C), lambda i: (0, i, 0)),
            pl.BlockSpec((1, C), lambda i: (0, 0)),
            pl.BlockSpec((1, C), lambda i: (0, 0)),
            pl.BlockSpec((C, cout_p), lambda i: (0, 0)),
        ],
        out_specs=pl.BlockSpec((tm, cout_p), lambda i: (i, 0)),
        compiler_params=pltpu.CompilerParams(
            dimension_semantics=("parallel",),
            vmem_limit_bytes=vmem_limit,
        ),
    )(x, scale, shift, w_k)

    out = out2d[:, :Cout].reshape(N, Ho, Wo, Cout)
    return jnp.transpose(out, (0, 3, 1, 2))  # back to NCHW


# ----------------------------------------------------------------------------
# Parameter construction (deterministic, synthetic)
# ----------------------------------------------------------------------------
def init_transition_params(key, in_channels, out_channels):
    ks = jax.random.split(key, 5)
    return dict(
        gamma=1.0 + 0.1 * jax.random.normal(ks[0], (in_channels,), jnp.float32),
        beta=0.1 * jax.random.normal(ks[1], (in_channels,), jnp.float32),
        running_mean=0.1 * jax.random.normal(ks[2], (in_channels,), jnp.float32),
        running_var=1.0 + 0.1 * jax.random.uniform(ks[3], (in_channels,), jnp.float32),
        conv_w=0.1 * jax.random.normal(ks[4], (in_channels, out_channels), jnp.float32),
    )


# ----------------------------------------------------------------------------
# Pure-JAX reference (conv then pool, matching the PyTorch module order)
# ----------------------------------------------------------------------------
def _ref_forward(x_nchw, params, eps=1e-5):
    scale = params["gamma"] / jnp.sqrt(params["running_var"] + eps)
    shift = params["beta"] - params["running_mean"] * scale
    x = jnp.transpose(x_nchw, (0, 2, 3, 1))  # NHWC
    y = x * scale + shift
    t = y * jnp.tanh(jax.nn.softplus(y))  # Mish
    c = jnp.einsum("nhwc,cd->nhwd", t, params["conv_w"])  # 1x1 conv
    N, H, W, D = c.shape
    Ho, Wo = H // 2, W // 2
    c = c[:, : Ho * 2, : Wo * 2, :].reshape(N, Ho, 2, Wo, 2, D).mean(axis=(2, 4))
    return jnp.transpose(c, (0, 3, 1, 2))  # NCHW


if __name__ == "__main__":
    # Small shapes consistent with a DenseNet transition layer.
    N, Cin, Cout, H, W = 2, 24, 12, 16, 16

    x = jax.random.normal(jax.random.PRNGKey(0), (N, Cin, H, W), jnp.float32)
    params = init_transition_params(jax.random.PRNGKey(1), Cin, Cout)

    out = jax.block_until_ready(transition_forward(x, params))
    assert out.shape == (N, Cout, H // 2, W // 2), out.shape

    ref = jax.block_until_ready(_ref_forward(x, params))
    # Tolerance accounts for the single-exp Mish + approx EUP reciprocal.
    np.testing.assert_allclose(np.asarray(out), np.asarray(ref), atol=2e-3, rtol=2e-3)

    print("KERNEL_OK")
</pallas_src>

<mosaic_0001>
module attributes {stable_mosaic.version = 11 : i64} {
  func.func @_transition_kernel(%arg0: i32, %arg1: memref<4x64x24xf32, #tpu.memory_space<vmem>>, %arg2: memref<1x24xf32, #tpu.memory_space<vmem>>, %arg3: memref<1x24xf32, #tpu.memory_space<vmem>>, %arg4: memref<24x128xf32, #tpu.memory_space<vmem>>, %arg5: memref<64x128xf32, #tpu.memory_space<vmem>>) attributes {dimension_semantics = [#tpu.dimension_semantics<parallel>], iteration_bounds = array<i64: 2>, scalar_prefetch = 0 : i64, scratch_operands = 0 : i64, tpu.core_type = #tpu.core_type<tc>, window_params = [{transform_indices = @transform_0, window_bounds = array<i64: 4, 64, 24>}, {pipeline_mode = #tpu.pipeline_mode<synchronous>, transform_indices = @transform_1, window_bounds = array<i64: 1, 24>}, {pipeline_mode = #tpu.pipeline_mode<synchronous>, transform_indices = @transform_2, window_bounds = array<i64: 1, 24>}, {pipeline_mode = #tpu.pipeline_mode<synchronous>, transform_indices = @transform_3, window_bounds = array<i64: 24, 128>}, {transform_indices = @transform_4, window_bounds = array<i64: 64, 128>}]} {
    %c0 = arith.constant 0 : index
    %c0_0 = arith.constant 0 : index
    %0 = vector.load %arg2[%c0, %c0_0] : memref<1x24xf32, #tpu.memory_space<vmem>>, vector<1x24xf32>
    %1 = vector.shape_cast %0 : vector<1x24xf32> to vector<1x24xf32>
    %2 = vector.broadcast %1 : vector<1x24xf32> to vector<64x24xf32>
    %c0_1 = arith.constant 0 : index
    %c0_2 = arith.constant 0 : index
    %3 = vector.load %arg3[%c0_1, %c0_2] : memref<1x24xf32, #tpu.memory_space<vmem>>, vector<1x24xf32>
    %4 = vector.shape_cast %3 : vector<1x24xf32> to vector<1x24xf32>
    %5 = vector.broadcast %4 : vector<1x24xf32> to vector<64x24xf32>
    %c0_3 = arith.constant 0 : index
    %c0_4 = arith.constant 0 : index
    %c0_5 = arith.constant 0 : index
    %6 = vector.load %arg1[%c0_3, %c0_4, %c0_5] : memref<4x64x24xf32, #tpu.memory_space<vmem>>, vector<1x64x24xf32>
    %7 = vector.shape_cast %6 : vector<1x64x24xf32> to vector<64x24xf32>
    %8 = arith.mulf %7, %2 : vector<64x24xf32>
    %9 = arith.addf %8, %5 : vector<64x24xf32>
    %cst = arith.constant 2.000000e+01 : f32
    %10 = vector.broadcast %cst : f32 to vector<64x24xf32>
    %11 = arith.minimumf %9, %10 : vector<64x24xf32>
    %12 = math.exp %11 : vector<64x24xf32>
    %cst_6 = arith.constant 2.000000e+00 : f32
    %13 = vector.broadcast %cst_6 : f32 to vector<64x24xf32>
    %14 = arith.addf %12, %13 : vector<64x24xf32>
    %15 = arith.mulf %12, %14 : vector<64x24xf32>
    %16 = arith.mulf %9, %15 : vector<64x24xf32>
    %cst_7 = arith.constant 2.000000e+00 : f32
    %17 = vector.broadcast %cst_7 : f32 to vector<64x24xf32>
    %18 = arith.addf %15, %17 : vector<64x24xf32>
    %19 = tpu.reciprocal %18 {approx = true} : vector<64x24xf32> -> vector<64x24xf32>
    %20 = arith.mulf %16, %19 : vector<64x24xf32>
    %c1 = arith.constant 1 : index
    %c0_8 = arith.constant 0 : index
    %c0_9 = arith.constant 0 : index
    %21 = vector.load %arg1[%c1, %c0_8, %c0_9] : memref<4x64x24xf32, #tpu.memory_space<vmem>>, vector<1x64x24xf32>
    %22 = vector.shape_cast %21 : vector<1x64x24xf32> to vector<64x24xf32>
    %23 = arith.mulf %22, %2 : vector<64x24xf32>
    %24 = arith.addf %23, %5 : vector<64x24xf32>
    %cst_10 = arith.constant 2.000000e+01 : f32
    %25 = vector.broadcast %cst_10 : f32 to vector<64x24xf32>
    %26 = arith.minimumf %24, %25 : vector<64x24xf32>
    %27 = math.exp %26 : vector<64x24xf32>
    %cst_11 = arith.constant 2.000000e+00 : f32
    %28 = vector.broadcast %cst_11 : f32 to vector<64x24xf32>
    %29 = arith.addf %27, %28 : vector<64x24xf32>
    %30 = arith.mulf %27, %29 : vector<64x24xf32>
    %31 = arith.mulf %24, %30 : vector<64x24xf32>
    %cst_12 = arith.constant 2.000000e+00 : f32
    %32 = vector.broadcast %cst_12 : f32 to vector<64x24xf32>
    %33 = arith.addf %30, %32 : vector<64x24xf32>
    %34 = tpu.reciprocal %33 {approx = true} : vector<64x24xf32> -> vector<64x24xf32>
    %35 = arith.mulf %31, %34 : vector<64x24xf32>
    %36 = arith.addf %20, %35 : vector<64x24xf32>
    %c2 = arith.constant 2 : index
    %c0_13 = arith.constant 0 : index
    %c0_14 = arith.constant 0 : index
    %37 = vector.load %arg1[%c2, %c0_13, %c0_14] : memref<4x64x24xf32, #tpu.memory_space<vmem>>, vector<1x64x24xf32>
    %38 = vector.shape_cast %37 : vector<1x64x24xf32> to vector<64x24xf32>
    %39 = arith.mulf %38, %2 : vector<64x24xf32>
    %40 = arith.addf %39, %5 : vector<64x24xf32>
    %cst_15 = arith.constant 2.000000e+01 : f32
    %41 = vector.broadcast %cst_15 : f32 to vector<64x24xf32>
    %42 = arith.minimumf %40, %41 : vector<64x24xf32>
    %43 = math.exp %42 : vector<64x24xf32>
    %cst_16 = arith.constant 2.000000e+00 : f32
    %44 = vector.broadcast %cst_16 : f32 to vector<64x24xf32>
    %45 = arith.addf %43, %44 : vector<64x24xf32>
    %46 = arith.mulf %43, %45 : vector<64x24xf32>
    %47 = arith.mulf %40, %46 : vector<64x24xf32>
    %cst_17 = arith.constant 2.000000e+00 : f32
    %48 = vector.broadcast %cst_17 : f32 to vector<64x24xf32>
    %49 = arith.addf %46, %48 : vector<64x24xf32>
    %50 = tpu.reciprocal %49 {approx = true} : vector<64x24xf32> -> vector<64x24xf32>
    %51 = arith.mulf %47, %50 : vector<64x24xf32>
    %52 = arith.addf %36, %51 : vector<64x24xf32>
    %c3 = arith.constant 3 : index
    %c0_18 = arith.constant 0 : index
    %c0_19 = arith.constant 0 : index
    %53 = vector.load %arg1[%c3, %c0_18, %c0_19] : memref<4x64x24xf32, #tpu.memory_space<vmem>>, vector<1x64x24xf32>
    %54 = vector.shape_cast %53 : vector<1x64x24xf32> to vector<64x24xf32>
    %55 = arith.mulf %54, %2 : vector<64x24xf32>
    %56 = arith.addf %55, %5 : vector<64x24xf32>
    %cst_20 = arith.constant 2.000000e+01 : f32
    %57 = vector.broadcast %cst_20 : f32 to vector<64x24xf32>
    %58 = arith.minimumf %56, %57 : vector<64x24xf32>
    %59 = math.exp %58 : vector<64x24xf32>
    %cst_21 = arith.constant 2.000000e+00 : f32
    %60 = vector.broadcast %cst_21 : f32 to vector<64x24xf32>
    %61 = arith.addf %59, %60 : vector<64x24xf32>
    %62 = arith.mulf %59, %61 : vector<64x24xf32>
    %63 = arith.mulf %56, %62 : vector<64x24xf32>
    %cst_22 = arith.constant 2.000000e+00 : f32
    %64 = vector.broadcast %cst_22 : f32 to vector<64x24xf32>
    %65 = arith.addf %62, %64 : vector<64x24xf32>
    %66 = tpu.reciprocal %65 {approx = true} : vector<64x24xf32> -> vector<64x24xf32>
    %67 = arith.mulf %63, %66 : vector<64x24xf32>
    %68 = arith.addf %52, %67 : vector<64x24xf32>
    %c0_23 = arith.constant 0 : index
    %c0_24 = arith.constant 0 : index
    %69 = vector.load %arg4[%c0_23, %c0_24] : memref<24x128xf32, #tpu.memory_space<vmem>>, vector<24x128xf32>
    %cst_25 = arith.constant dense<0.000000e+00> : vector<64x128xf32>
    %70 = tpu.matmul %68, %69, %cst_25 {dimension_numbers = #tpu.dot_dimension_numbers<[1], [0], [0], [1], [0, 0, 1, 1], [], []>} : vector<64x24xf32>, vector<24x128xf32>, vector<64x128xf32> -> vector<64x128xf32>
    %c0_26 = arith.constant 0 : index
    %c0_27 = arith.constant 0 : index
    %71 = vector.load %arg5[%c0_26, %c0_27] : memref<64x128xf32, #tpu.memory_space<vmem>>, vector<64x128xf32>
    tpu.vector_store %arg5[%c0_26, %c0_27], %70 {strides = array<i32>} : memref<64x128xf32, #tpu.memory_space<vmem>>, vector<64x128xf32>,
    return
  }
  func.func @transform_0(%arg0: i32) -> (i32, i32, i32) {
    %c0_i32 = arith.constant 0 : i32
    %c0_i32_0 = arith.constant 0 : i32
    %c0_i32_1 = arith.constant 0 : i32
    return %c0_i32, %arg0, %c0_i32_0 : i32, i32, i32
  }
  func.func @transform_1(%arg0: i32) -> (i32, i32) {
    %c0_i32 = arith.constant 0 : i32
    %c0_i32_0 = arith.constant 0 : i32
    %c0_i32_1 = arith.constant 0 : i32
    return %c0_i32, %c0_i32_0 : i32, i32
  }
  func.func @transform_2(%arg0: i32) -> (i32, i32) {
    %c0_i32 = arith.constant 0 : i32
    %c0_i32_0 = arith.constant 0 : i32
    %c0_i32_1 = arith.constant 0 : i32
    return %c0_i32, %c0_i32_0 : i32, i32
  }
  func.func @transform_3(%arg0: i32) -> (i32, i32) {
    %c0_i32 = arith.constant 0 : i32
    %c0_i32_0 = arith.constant 0 : i32
    %c0_i32_1 = arith.constant 0 : i32
    return %c0_i32, %c0_i32_0 : i32, i32
  }
  func.func @transform_4(%arg0: i32) -> (i32, i32) {
    %c0_i32 = arith.constant 0 : i32
    %c0_i32_0 = arith.constant 0 : i32
    return %arg0, %c0_i32 : i32, i32
  }
}

</mosaic_0001>

<llo_original>
// kernel: tpu_custom_call.1
$region0: #{tpu_custom_call.1}
  #allocation0 [shape = 'u32[]', space=smem, size = 0x4, offset = 0x4, fixed_abs, tag = 'smem constant byte address 0x4 - core index']
  #allocation1 [shape = 'u32[72,128]{1,0:T(1,128)}', space=vmem, size = 0x9000, scoped, tag = 'internal scratch']
  %s0 = inlined_call_operand.vmem [shape: f32[4,128,24], index: 0, kind: input, shape index: {}]
  %s1 = inlined_call_operand.vmem [shape: f32[1,24], index: 1, kind: input, shape index: {}]
  %s2 = inlined_call_operand.vmem [shape: f32[1,24], index: 2, kind: input, shape index: {}]
  %s3 = inlined_call_operand.vmem [shape: f32[24,128], index: 3, kind: input, shape index: {}]
  %s4 = inlined_call_operand.hbm [shape: f32[128,128], index: 4, kind: output, shape index: {}]
  %s5 = sld [smem:[#allocation0]]
  $region87: #{tpu_custom_call.1} parent=0
    _
  %s7 = ssub.s32 1, %s5
  %s8 = scalar_select 0, %s7, %s5
  $region1: #{tpu_custom_call.1} parent=0
    #allocation2 [shape = 'u8[262144]{0}', space=vmem, size = 0x40000, scoped, tag = 'input window, operand 0']
    #allocation3 [shape = 'u8[65536]{0}', space=vmem, size = 0x10000, scoped, tag = 'output window, operand 0']
    #allocation4 [shape = 's32[2]{0}', space=sflag, size = 0x8, scoped, tag = 'scoped memory for tpu_custom_call.1']
    %9 = vsyncpa [#allocation4], 0
    %s10 = scalar_lea.sflag [#allocation4], 1
    %11 = vsyncpa %s10, 0
    loop: start=0, step=1, limit=4
    $region2: #{tpu_custom_call.1} parent=1 // loop_pre_header
      _
    $region3: #{tpu_custom_call.1} parent=1 // loop_header
      %s13 = sphi 0, %s17
      %p14 = scmp.ge.s32.totalorder %s13, 4
      %s23 = sphi 0, %s25
      %s26 = sphi 0, %s23
      %s27 = sphi 0, %s26
      %s43 = sphi 0, %s27
      %s47 = sphi 0, %s47
      %s49 = sphi 0, %s47
      %s50 = sphi 0, %s49
      %s64 = sphi 0, %s50
      %s68 = sphi 0, %s68
      %s70 = sphi 0, %s68
      %s71 = sphi 0, %s70
      %s85 = sphi 0, %s71
      %s89 = sphi 0, %s89
      %s91 = sphi 0, %s89
      %s92 = sphi 0, %s91
      %s106 = sphi 0, %s92
      %s112 = sphi 0, %s114
      %s115 = sphi 0, %s112
      %s116 = sphi 0, %s115
      %s132 = sphi 0, %s116
    $region4: #{tpu_custom_call.1} parent=1 // loop_header_branch
      %16 = sbr.rel (%p14) target = $region8
    $region5: #{tpu_custom_call.1} parent=1 // loop_body
      %s18 = ssub.s32 %s13, 1
      %s19 = ssub.s32 %s13, 2
      %s20 = sadd.s32 %s13, 1
      %s21 = ssub.s32 %s13, %s20
      %p22 = scmp.eq.s32.totalorder %s21, 0
      %s24 = sadd.s32 %s23, 1
      %s25 = scalar_select %p22, %s23, %s24
      %p28 = pneg %p22
      %p29 = scmp.eq.s32.totalorder %s13, 1
      %p30 = por %p28, %p29
      %p31 = scmp.ne.s32.totalorder %s23, %s26
      %p32 = scmp.eq.s32.totalorder %s13, 0
      %p33 = por %p31, %p32
      %p34 = scmp.ne.s32.totalorder %s23, %s26
      %p35 = scmp.eq.s32.totalorder %s18, 1
      %p36 = por %p34, %p35
      %p37 = scmp.ne.s32.totalorder %s26, %s27
      %p38 = scmp.eq.s32.totalorder %s18, 0
      %p39 = por %p37, %p38
      %p40 = scmp.ne.s32.totalorder %s26, %s27
      %p41 = scmp.eq.s32.totalorder %s19, 1
      %p42 = por %p40, %p41
      %p44 = scmp.ne.s32.totalorder %s27, %s43
      %p45 = scmp.eq.s32.totalorder %s19, 0
      %p46 = por %p44, %p45
      %s48 = sadd.s32 %s47, 1
      %p51 = scmp.eq.s32.totalorder %s13, 1
      %p52 = scmp.ne.s32.totalorder %s47, %s49
      %p53 = scmp.eq.s32.totalorder %s13, 0
      %p54 = por %p52, %p53
      %p55 = scmp.ne.s32.totalorder %s47, %s49
      %p56 = scmp.eq.s32.totalorder %s18, 1
      %p57 = por %p55, %p56
      %p58 = scmp.ne.s32.totalorder %s49, %s50
      %p59 = scmp.eq.s32.totalorder %s18, 0
      %p60 = por %p58, %p59
      %p61 = scmp.ne.s32.totalorder %s49, %s50
      %p62 = scmp.eq.s32.totalorder %s19, 1
      %p63 = por %p61, %p62
      %p65 = scmp.ne.s32.totalorder %s50, %s64
      %p66 = scmp.eq.s32.totalorder %s19, 0
      %p67 = por %p65, %p66
      %s69 = sadd.s32 %s68, 1
      %p72 = scmp.eq.s32.totalorder %s13, 1
      %p73 = scmp.ne.s32.totalorder %s68, %s70
      %p74 = scmp.eq.s32.totalorder %s13, 0
      %p75 = por %p73, %p74
      %p76 = scmp.ne.s32.totalorder %s68, %s70
      %p77 = scmp.eq.s32.totalorder %s18, 1
      %p78 = por %p76, %p77
      %p79 = scmp.ne.s32.totalorder %s70, %s71
      %p80 = scmp.eq.s32.totalorder %s18, 0
      %p81 = por %p79, %p80
      %p82 = scmp.ne.s32.totalorder %s70, %s71
      %p83 = scmp.eq.s32.totalorder %s19, 1
      %p84 = por %p82, %p83
      %p86 = scmp.ne.s32.totalorder %s71, %s85
      %p87 = scmp.eq.s32.totalorder %s19, 0
      %p88 = por %p86, %p87
      %s90 = sadd.s32 %s89, 1
      %p93 = scmp.eq.s32.totalorder %s13, 1
      %p94 = scmp.ne.s32.totalorder %s89, %s91
      %p95 = scmp.eq.s32.totalorder %s13, 0
      %p96 = por %p94, %p95
      %p97 = scmp.ne.s32.totalorder %s89, %s91
      %p98 = scmp.eq.s32.totalorder %s18, 1
      %p99 = por %p97, %p98
      %p100 = scmp.ne.s32.totalorder %s91, %s92
      %p101 = scmp.eq.s32.totalorder %s18, 0
      %p102 = por %p100, %p101
      %p103 = scmp.ne.s32.totalorder %s91, %s92
      %p104 = scmp.eq.s32.totalorder %s19, 1
      %p105 = por %p103, %p104
      %p107 = scmp.ne.s32.totalorder %s92, %s106
      %p108 = scmp.eq.s32.totalorder %s19, 0
      %p109 = por %p107, %p108
      %s110 = ssub.s32 %s13, %s20
      %p111 = scmp.eq.s32.totalorder %s110, 0
      %s113 = sadd.s32 %s112, 1
      %s114 = scalar_select %p111, %s112, %s113
      %p117 = pneg %p111
      %p118 = scmp.eq.s32.totalorder %s13, 1
      %p119 = por %p117, %p118
      %p120 = scmp.ne.s32.totalorder %s112, %s115
      %p121 = scmp.eq.s32.totalorder %s13, 0
      %p122 = por %p120, %p121
      %p123 = scmp.ne.s32.totalorder %s112, %s115
      %p124 = scmp.eq.s32.totalorder %s18, 1
      %p125 = por %p123, %p124
      %p126 = scmp.ne.s32.totalorder %s115, %s116
      %p127 = scmp.eq.s32.totalorder %s18, 0
      %p128 = por %p126, %p127
      %p129 = scmp.ne.s32.totalorder %s115, %s116
      %p130 = scmp.eq.s32.totalorder %s19, 1
      %p131 = por %p129, %p130
      %p133 = scmp.ne.s32.totalorder %s116, %s132
      %p134 = scmp.eq.s32.totalorder %s19, 0
      %p135 = por %p133, %p134
      %p136 = scmp.le.s32.totalorder 1, %s13
      %p137 = scmp.lt.s32.totalorder %s13, 3
      %p138 = pnand %p136, %p137
      %p139 = pneg %p138
      // Predicated region
      $region9: #{tpu_custom_call.1} parent=5 // pred_check
        _
      $region10: #{tpu_custom_call.1} parent=5 // pred_check_branch
        %141 = sbr.rel (%p138) target = $region12
      $region11: #{tpu_custom_call.1} parent=5 // pred_region
        %s142 = ssub.s32 %s13, 1
        // Predicated region
        $region13: #{tpu_custom_call.1} parent=11 // pred_check
          %p143 = pneg %p60
        $region14: #{tpu_custom_call.1} parent=11 // pred_check_branch
          %145 = sbr.rel (%p143) target = $region16
        $region15: #{tpu_custom_call.1} parent=11 // pred_region
          _
        $region16: #{tpu_custom_call.1} parent=11 // pred_fallthru
          _
        // Predicated region
        $region17: #{tpu_custom_call.1} parent=11 // pred_check
          %p146 = pneg %p81
        $region18: #{tpu_custom_call.1} parent=11 // pred_check_branch
          %148 = sbr.rel (%p146) target = $region20
        $region19: #{tpu_custom_call.1} parent=11 // pred_region
          _
        $region20: #{tpu_custom_call.1} parent=11 // pred_fallthru
          _
        // Predicated region
        $region21: #{tpu_custom_call.1} parent=11 // pred_check
          %p149 = pneg %p102
        $region22: #{tpu_custom_call.1} parent=11 // pred_check_branch
          %151 = sbr.rel (%p149) target = $region24
        $region23: #{tpu_custom_call.1} parent=11 // pred_region
          _
        $region24: #{tpu_custom_call.1} parent=11 // pred_fallthru
          _
      $region12: #{tpu_custom_call.1} parent=5 // pred_fallthru
        _
      %p152 = scmp.lt.s32.totalorder %s13, 2
      // Predicated region
      $region25: #{tpu_custom_call.1} parent=5 // pred_check
        %p153 = pneg %p152
      $region26: #{tpu_custom_call.1} parent=5 // pred_check_branch
        %155 = sbr.rel (%p153) target = $region28
      $region27: #{tpu_custom_call.1} parent=5 // pred_region
        // Predicated region
        $region29: #{tpu_custom_call.1} parent=27 // pred_check
          %p156 = pneg %p33
        $region30: #{tpu_custom_call.1} parent=27 // pred_check_branch
          %158 = sbr.rel (%p156) target = $region32
        $region31: #{tpu_custom_call.1} parent=27 // pred_region
          %s159 = sand.u32 %s23, 1
          %s160 = sand.u32 %s23, 1
          %s161 = smul.addr %s160, 256
          %s162 = scalar_lea.vmem [#allocation2], %s161
          %s163 = smul.u32 8, %s13
          %s164 = smul.addr %s163, 8
          %s165 = scalar_lea.vmem %s0, %s164
          // Predicated region
          $region33: #{tpu_custom_call.1} parent=31 // pred_check
            _
          $region34: #{tpu_custom_call.1} parent=31 // pred_check_branch
            %167 = sbr.rel (0) target = $region36
          $region35: #{tpu_custom_call.1} parent=31 // pred_region
            // Predicated region
            $region37: #{tpu_custom_call.1} parent=35 // pred_check
              _
            $region38: #{tpu_custom_call.1} parent=35 // pred_check_branch
              %169 = sbr.rel (0) target = $region40
            $region39: #{tpu_custom_call.1} parent=35 // pred_region
              // Predicated region
              $region52: #{tpu_custom_call.1} parent=39 // pred_check
                _
              $region53: #{tpu_custom_call.1} parent=39 // pred_check_branch
                %247 = sbr.rel (0) target = $region55
              $region54: #{tpu_custom_call.1} parent=39 // pred_region
                loop: start=0, step=1, limit=1
                $region56: #{tpu_custom_call.1} parent=54 // loop_pre_header
                  _
                $region57: #{tpu_custom_call.1} parent=54 // loop_header
                  %s249 = sphi 0, %s253
                  %p250 = scmp.ge.s32.totalorder %s249, 1
                  %s254 = sphi %s165, %s165
                  %s255 = sphi %s162, %s162
                $region58: #{tpu_custom_call.1} parent=54 // loop_header_branch
                  %252 = sbr.rel (%p250) target = $region62
                $region59: #{tpu_custom_call.1} parent=54 // loop_body
                  %v256 = vld [vmem:[%s254] sm:$0xff]
                  %257 = vst [vmem:[%s255] sm:$0xff] %v256
                  %v258 = vld [vmem:[%s254 + $0x8] sm:$0xff]
                  %259 = vst [vmem:[%s255 + $0x8] sm:$0xff] %v258
                  %v260 = vld [vmem:[%s254 + $0x10] sm:$0xff]
                  %261 = vst [vmem:[%s255 + $0x10] sm:$0xff] %v260
                  %v262 = vld [vmem:[%s254 + $0x18] sm:$0xff]
                  %263 = vst [vmem:[%s255 + $0x18] sm:$0xff] %v262
                  %v264 = vld [vmem:[%s254 + $0x20] sm:$0xff]
                  %265 = vst [vmem:[%s255 + $0x20] sm:$0xff] %v264
                  %v266 = vld [vmem:[%s254 + $0x28] sm:$0xff]
                  %267 = vst [vmem:[%s255 + $0x28] sm:$0xff] %v266
                  %v268 = vld [vmem:[%s254 + $0x30] sm:$0xff]
                  %269 = vst [vmem:[%s255 + $0x30] sm:$0xff] %v268
                  %v270 = vld [vmem:[%s254 + $0x38] sm:$0xff]
                  %271 = vst [vmem:[%s255 + $0x38] sm:$0xff] %v270
                  %v272 = vld [vmem:[%s254 + $0x80] sm:$0xff]
                  %273 = vst [vmem:[%s255 + $0x40] sm:$0xff] %v272
                  %v274 = vld [vmem:[%s254 + $0x88] sm:$0xff]
                  %275 = vst [vmem:[%s255 + $0x48] sm:$0xff] %v274
                  %v276 = vld [vmem:[%s254 + $0x90] sm:$0xff]
                  %277 = vst [vmem:[%s255 + $0x50] sm:$0xff] %v276
                  %v278 = vld [vmem:[%s254 + $0x98] sm:$0xff]
                  %279 = vst [vmem:[%s255 + $0x58] sm:$0xff] %v278
                  %v280 = vld [vmem:[%s254 + $0xa0] sm:$0xff]
                  %281 = vst [vmem:[%s255 + $0x60] sm:$0xff] %v280
                  %v282 = vld [vmem:[%s254 + $0xa8] sm:$0xff]
                  %283 = vst [vmem:[%s255 + $0x68] sm:$0xff] %v282
                  %v284 = vld [vmem:[%s254 + $0xb0] sm:$0xff]
                  %285 = vst [vmem:[%s255 + $0x70] sm:$0xff] %v284
                  %v286 = vld [vmem:[%s254 + $0xb8] sm:$0xff]
                  %287 = vst [vmem:[%s255 + $0x78] sm:$0xff] %v286
                  %v288 = vld [vmem:[%s254 + $0x100] sm:$0xff]
                  %289 = vst [vmem:[%s255 + $0x80] sm:$0xff] %v288
                  %v290 = vld [vmem:[%s254 + $0x108] sm:$0xff]
                  %291 = vst [vmem:[%s255 + $0x88] sm:$0xff] %v290
                  %v292 = vld [vmem:[%s254 + $0x110] sm:$0xff]
                  %293 = vst [vmem:[%s255 + $0x90] sm:$0xff] %v292
                  %v294 = vld [vmem:[%s254 + $0x118] sm:$0xff]
                  %295 = vst [vmem:[%s255 + $0x98] sm:$0xff] %v294
                  %v296 = vld [vmem:[%s254 + $0x120] sm:$0xff]
                  %297 = vst [vmem:[%s255 + $0xa0] sm:$0xff] %v296
                  %v298 = vld [vmem:[%s254 + $0x128] sm:$0xff]
                  %299 = vst [vmem:[%s255 + $0xa8] sm:$0xff] %v298
                  %v300 = vld [vmem:[%s254 + $0x130] sm:$0xff]
                  %301 = vst [vmem:[%s255 + $0xb0] sm:$0xff] %v300
                  %v302 = vld [vmem:[%s254 + $0x138] sm:$0xff]
                  %303 = vst [vmem:[%s255 + $0xb8] sm:$0xff] %v302
                  %v304 = vld [vmem:[%s254 + $0x180] sm:$0xff]
                  %305 = vst [vmem:[%s255 + $0xc0] sm:$0xff] %v304
                  %v306 = vld [vmem:[%s254 + $0x188] sm:$0xff]
                  %307 = vst [vmem:[%s255 + $0xc8] sm:$0xff] %v306
                  %v308 = vld [vmem:[%s254 + $0x190] sm:$0xff]
                  %309 = vst [vmem:[%s255 + $0xd0] sm:$0xff] %v308
                  %v310 = vld [vmem:[%s254 + $0x198] sm:$0xff]
                  %311 = vst [vmem:[%s255 + $0xd8] sm:$0xff] %v310
                  %v312 = vld [vmem:[%s254 + $0x1a0] sm:$0xff]
                  %313 = vst [vmem:[%s255 + $0xe0] sm:$0xff] %v312
                  %v314 = vld [vmem:[%s254 + $0x1a8] sm:$0xff]
                  %315 = vst [vmem:[%s255 + $0xe8] sm:$0xff] %v314
                  %v316 = vld [vmem:[%s254 + $0x1b0] sm:$0xff]
                  %317 = vst [vmem:[%s255 + $0xf0] sm:$0xff] %v316
                  %v318 = vld [vmem:[%s254 + $0x1b8] sm:$0xff]
                  %319 = vst [vmem:[%s255 + $0xf8] sm:$0xff] %v318
                $region60: #{tpu_custom_call.1} parent=54 // loop_footer
                  %s253 = sadd.s32 1, %s249
                $region61: #{tpu_custom_call.1} parent=54 // loop_footer_branch
                  %248 = sbr.rel target = $region57
                $region62: #{tpu_custom_call.1} parent=54 // loop_exit
                  _
              $region55: #{tpu_custom_call.1} parent=39 // pred_fallthru
                _
              // Predicated region
              $region63: #{tpu_custom_call.1} parent=39 // pred_check
                _
              $region64: #{tpu_custom_call.1} parent=39 // pred_check_branch
                %321 = sbr.rel target = $region66
              $region65: #{tpu_custom_call.1} parent=39 // pred_region
                _
              $region66: #{tpu_custom_call.1} parent=39 // pred_fallthru
                _
            $region40: #{tpu_custom_call.1} parent=35 // pred_fallthru
              _
            // Predicated region
            $region41: #{tpu_custom_call.1} parent=35 // pred_check
              _
            $region42: #{tpu_custom_call.1} parent=35 // pred_check_branch
              %171 = sbr.rel target = $region44
            $region43: #{tpu_custom_call.1} parent=35 // pred_region
              %s173 = ssub.s32 256, 1
              loop: start=0, step=1, limit=1
              $region45: #{tpu_custom_call.1} parent=43 // loop_pre_header
                _
              $region46: #{tpu_custom_call.1} parent=43 // loop_header
                %s175 = sphi 0, %s179
                %p176 = scmp.ge.s32.totalorder %s175, 1
                %s180 = sphi %s165, %s165
                %s181 = sphi %s162, %s162
              $region47: #{tpu_custom_call.1} parent=43 // loop_header_branch
                %178 = sbr.rel (%p176) target = $region51
              $region48: #{tpu_custom_call.1} parent=43 // loop_body
                %v182 = vld [vmem:[%s180] sm:%s173]
                %183 = vst [vmem:[%s181] sm:%s173] %v182
                %v184 = vld [vmem:[%s180 + $0x8] sm:%s173]
                %185 = vst [vmem:[%s181 + $0x8] sm:%s173] %v184
                %v186 = vld [vmem:[%s180 + $0x10] sm:%s173]
                %187 = vst [vmem:[%s181 + $0x10] sm:%s173] %v186
                %v188 = vld [vmem:[%s180 + $0x18] sm:%s173]
                %189 = vst [vmem:[%s181 + $0x18] sm:%s173] %v188
                %v190 = vld [vmem:[%s180 + $0x20] sm:%s173]
                %191 = vst [vmem:[%s181 + $0x20] sm:%s173] %v190
                %v192 = vld [vmem:[%s180 + $0x28] sm:%s173]
                %193 = vst [vmem:[%s181 + $0x28] sm:%s173] %v192
                %v194 = vld [vmem:[%s180 + $0x30] sm:%s173]
                %195 = vst [vmem:[%s181 + $0x30] sm:%s173] %v194
                %v196 = vld [vmem:[%s180 + $0x38] sm:%s173]
                %197 = vst [vmem:[%s181 + $0x38] sm:%s173] %v196
                %v198 = vld [vmem:[%s180 + $0x80] sm:%s173]
                %199 = vst [vmem:[%s181 + $0x40] sm:%s173] %v198
                %v200 = vld [vmem:[%s180 + $0x88] sm:%s173]
                %201 = vst [vmem:[%s181 + $0x48] sm:%s173] %v200
                %v202 = vld [vmem:[%s180 + $0x90] sm:%s173]
                %203 = vst [vmem:[%s181 + $0x50] sm:%s173] %v202
                %v204 = vld [vmem:[%s180 + $0x98] sm:%s173]
                %205 = vst [vmem:[%s181 + $0x58] sm:%s173] %v204
                %v206 = vld [vmem:[%s180 + $0xa0] sm:%s173]
                %207 = vst [vmem:[%s181 + $0x60] sm:%s173] %v206
                %v208 = vld [vmem:[%s180 + $0xa8] sm:%s173]
                %209 = vst [vmem:[%s181 + $0x68] sm:%s173] %v208
                %v210 = vld [vmem:[%s180 + $0xb0] sm:%s173]
                %211 = vst [vmem:[%s181 + $0x70] sm:%s173] %v210
                %v212 = vld [vmem:[%s180 + $0xb8] sm:%s173]
                %213 = vst [vmem:[%s181 + $0x78] sm:%s173] %v212
                %v214 = vld [vmem:[%s180 + $0x100] sm:%s173]
                %215 = vst [vmem:[%s181 + $0x80] sm:%s173] %v214
                %v216 = vld [vmem:[%s180 + $0x108] sm:%s173]
                %217 = vst [vmem:[%s181 + $0x88] sm:%s173] %v216
                %v218 = vld [vmem:[%s180 + $0x110] sm:%s173]
                %219 = vst [vmem:[%s181 + $0x90] sm:%s173] %v218
                %v220 = vld [vmem:[%s180 + $0x118] sm:%s173]
                %221 = vst [vmem:[%s181 + $0x98] sm:%s173] %v220
                %v222 = vld [vmem:[%s180 + $0x120] sm:%s173]
                %223 = vst [vmem:[%s181 + $0xa0] sm:%s173] %v222
                %v224 = vld [vmem:[%s180 + $0x128] sm:%s173]
                %225 = vst [vmem:[%s181 + $0xa8] sm:%s173] %v224
                %v226 = vld [vmem:[%s180 + $0x130] sm:%s173]
                %227 = vst [vmem:[%s181 + $0xb0] sm:%s173] %v226
                %v228 = vld [vmem:[%s180 + $0x138] sm:%s173]
                %229 = vst [vmem:[%s181 + $0xb8] sm:%s173] %v228
                %v230 = vld [vmem:[%s180 + $0x180] sm:%s173]
                %231 = vst [vmem:[%s181 + $0xc0] sm:%s173] %v230
                %v232 = vld [vmem:[%s180 + $0x188] sm:%s173]
                %233 = vst [vmem:[%s181 + $0xc8] sm:%s173] %v232
                %v234 = vld [vmem:[%s180 + $0x190] sm:%s173]
                %235 = vst [vmem:[%s181 + $0xd0] sm:%s173] %v234
                %v236 = vld [vmem:[%s180 + $0x198] sm:%s173]
                %237 = vst [vmem:[%s181 + $0xd8] sm:%s173] %v236
                %v238 = vld [vmem:[%s180 + $0x1a0] sm:%s173]
                %239 = vst [vmem:[%s181 + $0xe0] sm:%s173] %v238
                %v240 = vld [vmem:[%s180 + $0x1a8] sm:%s173]
                %241 = vst [vmem:[%s181 + $0xe8] sm:%s173] %v240
                %v242 = vld [vmem:[%s180 + $0x1b0] sm:%s173]
                %243 = vst [vmem:[%s181 + $0xf0] sm:%s173] %v242
                %v244 = vld [vmem:[%s180 + $0x1b8] sm:%s173]
                %245 = vst [vmem:[%s181 + $0xf8] sm:%s173] %v244
              $region49: #{tpu_custom_call.1} parent=43 // loop_footer
                %s179 = sadd.s32 1, %s175
              $region50: #{tpu_custom_call.1} parent=43 // loop_footer_branch
                %174 = sbr.rel target = $region46
              $region51: #{tpu_custom_call.1} parent=43 // loop_exit
                _
            $region44: #{tpu_custom_call.1} parent=35 // pred_fallthru
              _
          $region36: #{tpu_custom_call.1} parent=31 // pred_fallthru
            _
          %322 = vnop
        $region32: #{tpu_custom_call.1} parent=27 // pred_fallthru
          _
      $region28: #{tpu_custom_call.1} parent=5 // pred_fallthru
        _
      %p323 = scmp.le.s32.totalorder 1, %s13
      %p324 = scmp.lt.s32.totalorder %s13, 3
      %p325 = pnand %p323, %p324
      %p326 = pneg %p325
      // Predicated region
      $region67: #{tpu_custom_call.1} parent=5 // pred_check
        _
      $region68: #{tpu_custom_call.1} parent=5 // pred_check_branch
        %328 = sbr.rel (%p325) target = $region70
      $region69: #{tpu_custom_call.1} parent=5 // pred_region
        %s329 = ssub.s32 %s13, 1
        %s330 = sand.u32 %s26, 1
        %s331 = sand.u32 %s26, 1
        %s332 = smul.addr %s331, 256
        %s333 = scalar_lea.vmem [#allocation2], %s332
        // Predicated region
        $region71: #{tpu_custom_call.1} parent=69 // pred_check
          %p334 = pneg %p39
        $region72: #{tpu_custom_call.1} parent=69 // pred_check_branch
          %336 = sbr.rel (%p334) target = $region74
        $region73: #{tpu_custom_call.1} parent=69 // pred_region
          _
        $region74: #{tpu_custom_call.1} parent=69 // pred_fallthru
          _
        %s337 = sand.u32 %s26, 1
        %s338 = sand.u32 %s26, 1
        %s339 = smul.addr %s338, 256
        %s340 = scalar_lea.vmem [#allocation2], %s339
        %p341 = pneg %p39
        %p342 = pneg %p36
        %p343 = pneg %p60
        %p344 = pneg %p57
        %p345 = pneg %p81
        %p346 = pneg %p78
        %p347 = pneg %p102
        %p348 = pneg %p99
        %p349 = pneg %p128
        %p350 = pneg %p125
        %s351 = sand.u32 %s115, 1
        %s352 = scalar_lea.sflag [#allocation4], %s351
        %s353 = sand.u32 %s115, 1
        %s354 = smul.addr %s353, 64
        %s355 = scalar_lea.vmem [#allocation3], %s354
        %s356 = smul.u32 8, %s18
        %s357 = smul.u32 8, %s18
        %v358 = vld [vmem:[%s1] sm:$0x1]
        %v360 = vperm.slane %v358, 0
        %v362 = vld [vmem:[%s2] sm:$0x1]
        %v364 = vperm.slane %v362, 0
        %v366 = vld [vmem:[%s333] sm:$0xff]
        %v367 = vld [vmem:[%s333 + $0x8] sm:$0xff]
        %v368 = vld [vmem:[%s333 + $0x10] sm:$0xff]
        %v369 = vld [vmem:[%s333 + $0x18] sm:$0xff]
        %v370 = vld [vmem:[%s333 + $0x20] sm:$0xff]
        %v371 = vld [vmem:[%s333 + $0x28] sm:$0xff]
        %v372 = vld [vmem:[%s333 + $0x30] sm:$0xff]
        %v373 = vld [vmem:[%s333 + $0x38] sm:$0xff]
        %v374 = vmul.f32 %v366, %v360
        %v375 = vmul.f32 %v367, %v360
        %v376 = vmul.f32 %v368, %v360
        %v377 = vmul.f32 %v369, %v360
        %v378 = vmul.f32 %v370, %v360
        %v379 = vmul.f32 %v371, %v360
        %v380 = vmul.f32 %v372, %v360
        %v381 = vmul.f32 %v373, %v360
        %v382 = vadd.f32 %v374, %v364
        %v383 = vadd.f32 %v375, %v364
        %v384 = vadd.f32 %v376, %v364
        %v385 = vadd.f32 %v377, %v364
        %v386 = vadd.f32 %v378, %v364
        %v387 = vadd.f32 %v379, %v364
        %v388 = vadd.f32 %v380, %v364
        %v389 = vadd.f32 %v381, %v364
        %v390 = vmin.f32 %v382, 20.0
        %v391 = vmin.f32 %v383, 20.0
        %v392 = vmin.f32 %v384, 20.0
        %v393 = vmin.f32 %v385, 20.0
        %v394 = vmin.f32 %v386, 20.0
        %v395 = vmin.f32 %v387, 20.0
        %v396 = vmin.f32 %v388, 20.0
        %v397 = vmin.f32 %v389, 20.0
        %v398 = vmul.f32 %v390, 1.442695
        %v399 = vpow.pop %v398
        %v400 = vmul.f32 %v391, 1.442695
        %v401 = vpow.pop %v400
        %v402 = vmul.f32 %v392, 1.442695
        %v403 = vpow.pop %v402
        %v404 = vmul.f32 %v393, 1.442695
        %v405 = vpow.pop %v404
        %v406 = vmul.f32 %v394, 1.442695
        %v407 = vpow.pop %v406
        %v408 = vmul.f32 %v395, 1.442695
        %v409 = vpow.pop %v408
        %v410 = vmul.f32 %v396, 1.442695
        %v411 = vpow.pop %v410
        %v412 = vmul.f32 %v397, 1.442695
        %v413 = vpow.pop %v412
        %v414 = vadd.f32 %v399, 2.0
        %v415 = vadd.f32 %v401, 2.0
        %v416 = vadd.f32 %v403, 2.0
        %v417 = vadd.f32 %v405, 2.0
        %v418 = vadd.f32 %v407, 2.0
        %v419 = vadd.f32 %v409, 2.0
        %v420 = vadd.f32 %v411, 2.0
        %v421 = vadd.f32 %v413, 2.0
        %v422 = vmul.f32 %v399, %v414
        %v423 = vmul.f32 %v401, %v415
        %v424 = vmul.f32 %v403, %v416
        %v425 = vmul.f32 %v405, %v417
        %v426 = vmul.f32 %v407, %v418
        %v427 = vmul.f32 %v409, %v419
        %v428 = vmul.f32 %v411, %v420
        %v429 = vmul.f32 %v413, %v421
        %v430 = vmul.f32 %v382, %v422
        %v431 = vmul.f32 %v383, %v423
        %v432 = vmul.f32 %v384, %v424
        %v433 = vmul.f32 %v385, %v425
        %v434 = vmul.f32 %v386, %v426
        %v435 = vmul.f32 %v387, %v427
        %v436 = vmul.f32 %v388, %v428
        %v437 = vmul.f32 %v389, %v429
        %v438 = vadd.f32 %v422, 2.0
        %v439 = vadd.f32 %v423, 2.0
        %v440 = vadd.f32 %v424, 2.0
        %v441 = vadd.f32 %v425, 2.0
        %v442 = vadd.f32 %v426, 2.0
        %v443 = vadd.f32 %v427, 2.0
        %v444 = vadd.f32 %v428, 2.0
        %v445 = vadd.f32 %v429, 2.0
        %v446 = vrcp.pop %v438
        %v447 = vrcp.pop %v439
        %v448 = vrcp.pop %v440
        %v449 = vrcp.pop %v441
        %v450 = vrcp.pop %v442
        %v451 = vrcp.pop %v443
        %v452 = vrcp.pop %v444
        %v453 = vrcp.pop %v445
        %v454 = vmul.f32 %v430, %v446
        %v455 = vmul.f32 %v431, %v447
        %v456 = vmul.f32 %v432, %v448
        %v457 = vmul.f32 %v433, %v449
        %v458 = vmul.f32 %v434, %v450
        %v459 = vmul.f32 %v435, %v451
        %v460 = vmul.f32 %v436, %v452
        %v461 = vmul.f32 %v437, %v453
        %s462 = scalar_lea.vmem %s333, 64 [#allocation2]
        %v463 = vld [vmem:[%s462] sm:$0xff]
        %v464 = vld [vmem:[%s462 + $0x8] sm:$0xff]
        %v465 = vld [vmem:[%s462 + $0x10] sm:$0xff]
        %v466 = vld [vmem:[%s462 + $0x18] sm:$0xff]
        %v467 = vld [vmem:[%s462 + $0x20] sm:$0xff]
        %v468 = vld [vmem:[%s462 + $0x28] sm:$0xff]
        %v469 = vld [vmem:[%s462 + $0x30] sm:$0xff]
        %v470 = vld [vmem:[%s462 + $0x38] sm:$0xff]
        %v471 = vmul.f32 %v463, %v360
        %v472 = vmul.f32 %v464, %v360
        %v473 = vmul.f32 %v465, %v360
        %v474 = vmul.f32 %v466, %v360
        %v475 = vmul.f32 %v467, %v360
        %v476 = vmul.f32 %v468, %v360
        %v477 = vmul.f32 %v469, %v360
        %v478 = vmul.f32 %v470, %v360
        %v479 = vadd.f32 %v471, %v364
        %v480 = vadd.f32 %v472, %v364
        %v481 = vadd.f32 %v473, %v364
        %v482 = vadd.f32 %v474, %v364
        %v483 = vadd.f32 %v475, %v364
        %v484 = vadd.f32 %v476, %v364
        %v485 = vadd.f32 %v477, %v364
        %v486 = vadd.f32 %v478, %v364
        %v487 = vmin.f32 %v479, 20.0
        %v488 = vmin.f32 %v480, 20.0
        %v489 = vmin.f32 %v481, 20.0
        %v490 = vmin.f32 %v482, 20.0
        %v491 = vmin.f32 %v483, 20.0
        %v492 = vmin.f32 %v484, 20.0
        %v493 = vmin.f32 %v485, 20.0
        %v494 = vmin.f32 %v486, 20.0
        %v495 = vmul.f32 %v487, 1.442695
        %v496 = vpow.pop %v495
        %v497 = vmul.f32 %v488, 1.442695
        %v498 = vpow.pop %v497
        %v499 = vmul.f32 %v489, 1.442695
        %v500 = vpow.pop %v499
        %v501 = vmul.f32 %v490, 1.442695
        %v502 = vpow.pop %v501
        %v503 = vmul.f32 %v491, 1.442695
        %v504 = vpow.pop %v503
        %v505 = vmul.f32 %v492, 1.442695
        %v506 = vpow.pop %v505
        %v507 = vmul.f32 %v493, 1.442695
        %v508 = vpow.pop %v507
        %v509 = vmul.f32 %v494, 1.442695
        %v510 = vpow.pop %v509
        %v511 = vadd.f32 %v496, 2.0
        %v512 = vadd.f32 %v498, 2.0
        %v513 = vadd.f32 %v500, 2.0
        %v514 = vadd.f32 %v502, 2.0
        %v515 = vadd.f32 %v504, 2.0
        %v516 = vadd.f32 %v506, 2.0
        %v517 = vadd.f32 %v508, 2.0
        %v518 = vadd.f32 %v510, 2.0
        %v519 = vmul.f32 %v496, %v511
        %v520 = vmul.f32 %v498, %v512
        %v521 = vmul.f32 %v500, %v513
        %v522 = vmul.f32 %v502, %v514
        %v523 = vmul.f32 %v504, %v515
        %v524 = vmul.f32 %v506, %v516
        %v525 = vmul.f32 %v508, %v517
        %v526 = vmul.f32 %v510, %v518
        %v527 = vmul.f32 %v479, %v519
        %v528 = vmul.f32 %v480, %v520
        %v529 = vmul.f32 %v481, %v521
        %v530 = vmul.f32 %v482, %v522
        %v531 = vmul.f32 %v483, %v523
        %v532 = vmul.f32 %v484, %v524
        %v533 = vmul.f32 %v485, %v525
        %v534 = vmul.f32 %v486, %v526
        %v535 = vadd.f32 %v519, 2.0
        %v536 = vadd.f32 %v520, 2.0
        %v537 = vadd.f32 %v521, 2.0
        %v538 = vadd.f32 %v522, 2.0
        %v539 = vadd.f32 %v523, 2.0
        %v540 = vadd.f32 %v524, 2.0
        %v541 = vadd.f32 %v525, 2.0
        %v542 = vadd.f32 %v526, 2.0
        %v543 = vrcp.pop %v535
        %v544 = vrcp.pop %v536
        %v545 = vrcp.pop %v537
        %v546 = vrcp.pop %v538
        %v547 = vrcp.pop %v539
        %v548 = vrcp.pop %v540
        %v549 = vrcp.pop %v541
        %v550 = vrcp.pop %v542
        %v551 = vmul.f32 %v527, %v543
        %v552 = vmul.f32 %v528, %v544
        %v553 = vmul.f32 %v529, %v545
        %v554 = vmul.f32 %v530, %v546
        %v555 = vmul.f32 %v531, %v547
        %v556 = vmul.f32 %v532, %v548
        %v557 = vmul.f32 %v533, %v549
        %v558 = vmul.f32 %v534, %v550
        %v559 = vadd.f32 %v454, %v551
        %v560 = vadd.f32 %v455, %v552
        %v561 = vadd.f32 %v456, %v553
        %v562 = vadd.f32 %v457, %v554
        %v563 = vadd.f32 %v458, %v555
        %v564 = vadd.f32 %v459, %v556
        %v565 = vadd.f32 %v460, %v557
        %v566 = vadd.f32 %v461, %v558
        %s567 = scalar_lea.vmem %s333, 128 [#allocation2]
        %v568 = vld [vmem:[%s567] sm:$0xff]
        %v569 = vld [vmem:[%s567 + $0x8] sm:$0xff]
        %v570 = vld [vmem:[%s567 + $0x10] sm:$0xff]
        %v571 = vld [vmem:[%s567 + $0x18] sm:$0xff]
        %v572 = vld [vmem:[%s567 + $0x20] sm:$0xff]
        %v573 = vld [vmem:[%s567 + $0x28] sm:$0xff]
        %v574 = vld [vmem:[%s567 + $0x30] sm:$0xff]
        %v575 = vld [vmem:[%s567 + $0x38] sm:$0xff]
        %v576 = vmul.f32 %v568, %v360
        %v577 = vmul.f32 %v569, %v360
        %v578 = vmul.f32 %v570, %v360
        %v579 = vmul.f32 %v571, %v360
        %v580 = vmul.f32 %v572, %v360
        %v581 = vmul.f32 %v573, %v360
        %v582 = vmul.f32 %v574, %v360
        %v583 = vmul.f32 %v575, %v360
        %v584 = vadd.f32 %v576, %v364
        %v585 = vadd.f32 %v577, %v364
        %v586 = vadd.f32 %v578, %v364
        %v587 = vadd.f32 %v579, %v364
        %v588 = vadd.f32 %v580, %v364
        %v589 = vadd.f32 %v581, %v364
        %v590 = vadd.f32 %v582, %v364
        %v591 = vadd.f32 %v583, %v364
        %v592 = vmin.f32 %v584, 20.0
        %v593 = vmin.f32 %v585, 20.0
        %v594 = vmin.f32 %v586, 20.0
        %v595 = vmin.f32 %v587, 20.0
        %v596 = vmin.f32 %v588, 20.0
        %v597 = vmin.f32 %v589, 20.0
        %v598 = vmin.f32 %v590, 20.0
        %v599 = vmin.f32 %v591, 20.0
        %v600 = vmul.f32 %v592, 1.442695
        %v601 = vpow.pop %v600
        %v602 = vmul.f32 %v593, 1.442695
        %v603 = vpow.pop %v602
        %v604 = vmul.f32 %v594, 1.442695
        %v605 = vpow.pop %v604
        %v606 = vmul.f32 %v595, 1.442695
        %v607 = vpow.pop %v606
        %v608 = vmul.f32 %v596, 1.442695
        %v609 = vpow.pop %v608
        %v610 = vmul.f32 %v597, 1.442695
        %v611 = vpow.pop %v610
        %v612 = vmul.f32 %v598, 1.442695
        %v613 = vpow.pop %v612
        %v614 = vmul.f32 %v599, 1.442695
        %v615 = vpow.pop %v614
        %v616 = vadd.f32 %v601, 2.0
        %v617 = vadd.f32 %v603, 2.0
        %v618 = vadd.f32 %v605, 2.0
        %v619 = vadd.f32 %v607, 2.0
        %v620 = vadd.f32 %v609, 2.0
        %v621 = vadd.f32 %v611, 2.0
        %v622 = vadd.f32 %v613, 2.0
        %v623 = vadd.f32 %v615, 2.0
        %v624 = vmul.f32 %v601, %v616
        %v625 = vmul.f32 %v603, %v617
        %v626 = vmul.f32 %v605, %v618
        %v627 = vmul.f32 %v607, %v619
        %v628 = vmul.f32 %v609, %v620
        %v629 = vmul.f32 %v611, %v621
        %v630 = vmul.f32 %v613, %v622
        %v631 = vmul.f32 %v615, %v623
        %v632 = vmul.f32 %v584, %v624
        %v633 = vmul.f32 %v585, %v625
        %v634 = vmul.f32 %v586, %v626
        %v635 = vmul.f32 %v587, %v627
        %v636 = vmul.f32 %v588, %v628
        %v637 = vmul.f32 %v589, %v629
        %v638 = vmul.f32 %v590, %v630
        %v639 = vmul.f32 %v591, %v631
        %v640 = vadd.f32 %v624, 2.0
        %v641 = vadd.f32 %v625, 2.0
        %v642 = vadd.f32 %v626, 2.0
        %v643 = vadd.f32 %v627, 2.0
        %v644 = vadd.f32 %v628, 2.0
        %v645 = vadd.f32 %v629, 2.0
        %v646 = vadd.f32 %v630, 2.0
        %v647 = vadd.f32 %v631, 2.0
        %v648 = vrcp.pop %v640
        %v649 = vrcp.pop %v641
        %v650 = vrcp.pop %v642
        %v651 = vrcp.pop %v643
        %v652 = vrcp.pop %v644
        %v653 = vrcp.pop %v645
        %v654 = vrcp.pop %v646
        %v655 = vrcp.pop %v647
        %v656 = vmul.f32 %v632, %v648
        %v657 = vmul.f32 %v633, %v649
        %v658 = vmul.f32 %v634, %v650
        %v659 = vmul.f32 %v635, %v651
        %v660 = vmul.f32 %v636, %v652
        %v661 = vmul.f32 %v637, %v653
        %v662 = vmul.f32 %v638, %v654
        %v663 = vmul.f32 %v639, %v655
        %v664 = vadd.f32 %v559, %v656
        %v665 = vadd.f32 %v560, %v657
        %v666 = vadd.f32 %v561, %v658
        %v667 = vadd.f32 %v562, %v659
        %v668 = vadd.f32 %v563, %v660
        %v669 = vadd.f32 %v564, %v661
        %v670 = vadd.f32 %v565, %v662
        %v671 = vadd.f32 %v566, %v663
        %s672 = scalar_lea.vmem %s333, 192 [#allocation2]
        %v673 = vld [vmem:[%s672] sm:$0xff]
        %v674 = vld [vmem:[%s672 + $0x8] sm:$0xff]
        %v675 = vld [vmem:[%s672 + $0x10] sm:$0xff]
        %v676 = vld [vmem:[%s672 + $0x18] sm:$0xff]
        %v677 = vld [vmem:[%s672 + $0x20] sm:$0xff]
        %v678 = vld [vmem:[%s672 + $0x28] sm:$0xff]
        %v679 = vld [vmem:[%s672 + $0x30] sm:$0xff]
        %v680 = vld [vmem:[%s672 + $0x38] sm:$0xff]
        %v681 = vmul.f32 %v673, %v360
        %v682 = vmul.f32 %v674, %v360
        %v683 = vmul.f32 %v675, %v360
        %v684 = vmul.f32 %v676, %v360
        %v685 = vmul.f32 %v677, %v360
        %v686 = vmul.f32 %v678, %v360
        %v687 = vmul.f32 %v679, %v360
        %v688 = vmul.f32 %v680, %v360
        %v689 = vadd.f32 %v681, %v364
        %v690 = vadd.f32 %v682, %v364
        %v691 = vadd.f32 %v683, %v364
        %v692 = vadd.f32 %v684, %v364
        %v693 = vadd.f32 %v685, %v364
        %v694 = vadd.f32 %v686, %v364
        %v695 = vadd.f32 %v687, %v364
        %v696 = vadd.f32 %v688, %v364
        %v697 = vmin.f32 %v689, 20.0
        %v698 = vmin.f32 %v690, 20.0
        %v699 = vmin.f32 %v691, 20.0
        %v700 = vmin.f32 %v692, 20.0
        %v701 = vmin.f32 %v693, 20.0
        %v702 = vmin.f32 %v694, 20.0
        %v703 = vmin.f32 %v695, 20.0
        %v704 = vmin.f32 %v696, 20.0
        %v705 = vmul.f32 %v697, 1.442695
        %v706 = vpow.pop %v705
        %v707 = vmul.f32 %v698, 1.442695
        %v708 = vpow.pop %v707
        %v709 = vmul.f32 %v699, 1.442695
        %v710 = vpow.pop %v709
        %v711 = vmul.f32 %v700, 1.442695
        %v712 = vpow.pop %v711
        %v713 = vmul.f32 %v701, 1.442695
        %v714 = vpow.pop %v713
        %v715 = vmul.f32 %v702, 1.442695
        %v716 = vpow.pop %v715
        %v717 = vmul.f32 %v703, 1.442695
        %v718 = vpow.pop %v717
        %v719 = vmul.f32 %v704, 1.442695
        %v720 = vpow.pop %v719
        %v721 = vadd.f32 %v706, 2.0
        %v722 = vadd.f32 %v708, 2.0
        %v723 = vadd.f32 %v710, 2.0
        %v724 = vadd.f32 %v712, 2.0
        %v725 = vadd.f32 %v714, 2.0
        %v726 = vadd.f32 %v716, 2.0
        %v727 = vadd.f32 %v718, 2.0
        %v728 = vadd.f32 %v720, 2.0
        %v729 = vmul.f32 %v706, %v721
        %v730 = vmul.f32 %v708, %v722
        %v731 = vmul.f32 %v710, %v723
        %v732 = vmul.f32 %v712, %v724
        %v733 = vmul.f32 %v714, %v725
        %v734 = vmul.f32 %v716, %v726
        %v735 = vmul.f32 %v718, %v727
        %v736 = vmul.f32 %v720, %v728
        %v737 = vmul.f32 %v689, %v729
        %v738 = vmul.f32 %v690, %v730
        %v739 = vmul.f32 %v691, %v731
        %v740 = vmul.f32 %v692, %v732
        %v741 = vmul.f32 %v693, %v733
        %v742 = vmul.f32 %v694, %v734
        %v743 = vmul.f32 %v695, %v735
        %v744 = vmul.f32 %v696, %v736
        %v745 = vadd.f32 %v729, 2.0
        %v746 = vadd.f32 %v730, 2.0
        %v747 = vadd.f32 %v731, 2.0
        %v748 = vadd.f32 %v732, 2.0
        %v749 = vadd.f32 %v733, 2.0
        %v750 = vadd.f32 %v734, 2.0
        %v751 = vadd.f32 %v735, 2.0
        %v752 = vadd.f32 %v736, 2.0
        %v753 = vrcp.pop %v745
        %v754 = vrcp.pop %v746
        %v755 = vrcp.pop %v747
        %v756 = vrcp.pop %v748
        %v757 = vrcp.pop %v749
        %v758 = vrcp.pop %v750
        %v759 = vrcp.pop %v751
        %v760 = vrcp.pop %v752
        %v761 = vmul.f32 %v737, %v753
        %v762 = vmul.f32 %v738, %v754
        %v763 = vmul.f32 %v739, %v755
        %v764 = vmul.f32 %v740, %v756
        %v765 = vmul.f32 %v741, %v757
        %v766 = vmul.f32 %v742, %v758
        %v767 = vmul.f32 %v743, %v759
        %v768 = vmul.f32 %v744, %v760
        %v769 = vadd.f32 %v664, %v761
        %v770 = vadd.f32 %v665, %v762
        %v771 = vadd.f32 %v666, %v763
        %v772 = vadd.f32 %v667, %v764
        %v773 = vadd.f32 %v668, %v765
        %v774 = vadd.f32 %v669, %v766
        %v775 = vadd.f32 %v670, %v767
        %v776 = vadd.f32 %v671, %v768
        %v777 = vld [vmem:[%s3] sm:$0xff]
        %v778 = vld [vmem:[%s3 + $0x8] sm:$0xff]
        %v779 = vld [vmem:[%s3 + $0x10] sm:$0xff]
        %vm780 = vcmask 195584
        %v782 = vsel %vm780, %v769, 0
        %v785 = vsel %vm780, %v770, 0
        %v788 = vsel %vm780, %v771, 0
        %v791 = vsel %vm780, %v772, 0
        %v794 = vsel %vm780, %v773, 0
        %v797 = vsel %vm780, %v774, 0
        %v800 = vsel %vm780, %v775, 0
        %v803 = vsel %vm780, %v776, 0
        %805 = vmatpush.msra.mxu0 0.0
        %806 = vmatpush.msra.mxu0 0.0
        %807 = vmatpush.msra.mxu0 0.0
        %808 = vmatpush.msra.mxu0 0.0
        %809 = vmatpush.msra.mxu0 0.0
        %810 = vmatpush.msra.mxu0 0.0
        %811 = vmatpush.msra.mxu0 0.0
        %812 = vmatpush.msra.mxu0 0.0
        %813 = vmatpush.msra.mxu0 0.0
        %814 = vmatpush.msra.mxu0 0.0
        %815 = vmatpush.msra.mxu0 0.0
        %816 = vmatpush.msra.mxu0 0.0
        %817 = vmatpush.msra.mxu0 0.0
        %818 = vmatpush.msra.mxu0 %v779
        %819 = vmatpush.msra.mxu0 %v778
        %820 = vmatpush.msra.mxu0 %v777
        %821 = vmatmul.f32.gmra.mxu0 %v782
        %v822 = vpop.f32.mrf.mxu0
        %v823 = vadd.f32 0.0, %v822
        %824 = vmatmul.f32.gmra.mxu0 %v785
        %v825 = vpop.f32.mrf.mxu0
        %v826 = vadd.f32 0.0, %v825
        %827 = vmatmul.f32.gmra.mxu0 %v788
        %v828 = vpop.f32.mrf.mxu0
        %v829 = vadd.f32 0.0, %v828
        %830 = vmatmul.f32.gmra.mxu0 %v791
        %v831 = vpop.f32.mrf.mxu0
        %v832 = vadd.f32 0.0, %v831
        %833 = vmatmul.f32.gmra.mxu0 %v794
        %v834 = vpop.f32.mrf.mxu0
        %v835 = vadd.f32 0.0, %v834
        %836 = vmatmul.f32.gmra.mxu0 %v797
        %v837 = vpop.f32.mrf.mxu0
        %v838 = vadd.f32 0.0, %v837
        %839 = vmatmul.f32.gmra.mxu0 %v800
        %v840 = vpop.f32.mrf.mxu0
        %v841 = vadd.f32 0.0, %v840
        %842 = vmatmul.f32.gmra.mxu0 %v803
        %v843 = vpop.f32.mrf.mxu0
        %v844 = vadd.f32 0.0, %v843
        %845 = vdwg.mxu0
        %846 = vst [vmem:[%s355] sm:$0xff] %v823
        %847 = vst [vmem:[%s355 + $0x8] sm:$0xff] %v826
        %848 = vst [vmem:[%s355 + $0x10] sm:$0xff] %v829
        %849 = vst [vmem:[%s355 + $0x18] sm:$0xff] %v832
        %850 = vst [vmem:[%s355 + $0x20] sm:$0xff] %v835
        %851 = vst [vmem:[%s355 + $0x28] sm:$0xff] %v838
        %852 = vst [vmem:[%s355 + $0x30] sm:$0xff] %v841
        %853 = vst [vmem:[%s355 + $0x38] sm:$0xff] %v844
        %s854 = sand.u32 %s115, 1
        %s855 = scalar_lea.sflag [#allocation4], %s854
        %s856 = sand.u32 %s115, 1
        %s857 = smul.addr %s856, 64
        %s858 = scalar_lea.vmem [#allocation3], %s857
        // Predicated region
        $region75: #{tpu_custom_call.1} parent=69 // pred_check
          %p859 = pneg %p125
        $region76: #{tpu_custom_call.1} parent=69 // pred_check_branch
          %861 = sbr.rel (%p859) target = $region78
        $region77: #{tpu_custom_call.1} parent=69 // pred_region
          %s862 = smul.u32 8, %s18
          %864 = vsyncadd %s855, 0
          %s865 = smul.addr %s862, 8
          %s866 = scalar_lea.hbm %s4, %s865
          %s867 = sshll.u32 %s858, 4
          %s868 = int_to_ptr.vmem [resolvable:$true] %s867
          %s869 = sshll.u32 %s866, 4
          %s870 = int_to_ptr.hbm [resolvable:$true] %s869
          %875 = dma.vmem_to_hbm [thread:$0]  %s868, 1024, %s870, %s855, 128, 128, 8
        $region78: #{tpu_custom_call.1} parent=69 // pred_fallthru
          _
      $region70: #{tpu_custom_call.1} parent=5 // pred_fallthru
        _
      %p876 = scmp.le.s32.totalorder 2, %s13
      // Predicated region
      $region79: #{tpu_custom_call.1} parent=5 // pred_check
        %p877 = pneg %p876
      $region80: #{tpu_custom_call.1} parent=5 // pred_check_branch
        %879 = sbr.rel (%p877) target = $region82
      $region81: #{tpu_custom_call.1} parent=5 // pred_region
        %s880 = ssub.s32 %s13, 2
        // Predicated region
        $region83: #{tpu_custom_call.1} parent=81 // pred_check
          %p881 = pneg %p131
        $region84: #{tpu_custom_call.1} parent=81 // pred_check_branch
          %883 = sbr.rel (%p881) target = $region86
        $region85: #{tpu_custom_call.1} parent=81 // pred_region
          %s884 = sand.u32 %s116, 1
          %s885 = scalar_lea.sflag [#allocation4], %s884
          %s886 = sand.u32 %s116, 1
          %s887 = smul.addr %s886, 64
          %s888 = scalar_lea.vmem [#allocation3], %s887
          %890 = dma.done %s885, 1024
        $region86: #{tpu_custom_call.1} parent=81 // pred_fallthru
          _
      $region82: #{tpu_custom_call.1} parent=5 // pred_fallthru
        _
    $region6: #{tpu_custom_call.1} parent=1 // loop_footer
      %s17 = sadd.s32 1, %s13
    $region7: #{tpu_custom_call.1} parent=1 // loop_footer_branch
      %12 = sbr.rel target = $region3
    $region8: #{tpu_custom_call.1} parent=1 // loop_exit
      _
    %891 = vsyncpa [#allocation4], 1
    %s892 = scalar_lea.sflag [#allocation4], 1
    %893 = vsyncpa %s892, 1

</llo_original>
